<compile_context>
chip_gen: v7x
topology: tpu7x:2x2x1
jax: 0.10.0
libtpu: 0.0.40
codegen_flags: <defaults>
</compile_context>

<pallas_src>
import functools

import jax
import jax.numpy as jnp
from jax.experimental import pallas as pl
from jax.experimental.pallas import tpu as pltpu


def _round_up(x, m):
    return ((x + m - 1) // m) * m


# ----------------------------------------------------------------------------
# Pallas kernel: Linear + exact GELU + LayerNorm + cls fill + concat + "T"
# ----------------------------------------------------------------------------
def _fused_encoding_kernel(x_ref, w_ref, b_ref, g_ref, beta_ref, cls_ref,
                           te_ref, o_ref, *, d_model, num_feats, ts, eps):
    """One sequence tile (all batch rows).

    Block shapes:
      x_ref   : (B, ts, d_in)     te_ref : (B, ts, t_dim)
      w_ref   : (d_in, d_model)   b/g/beta/cls refs : (1, d_model)
      o_ref   : (ts, B, d_model + t_dim)   -- final transposed layout
    """
    si = pl.program_id(0)
    n_batch = x_ref.shape[0]

    # Which rows of this seq tile are real feature rows (vs. cls/query rows).
    row = si * ts + jax.lax.broadcasted_iota(jnp.int32, (ts, 1), 0)
    is_feat = row < num_feats                                     # (ts, 1)

    # Hoisted, batch-invariant values (JAX does not CSE broadcast_in_dim).
    bias = b_ref[...].astype(jnp.float32)                         # (1, d_model)
    gamma = g_ref[...].astype(jnp.float32)
    beta = beta_ref[...].astype(jnp.float32)
    cls_rows = jnp.broadcast_to(cls_ref[...].astype(jnp.float32),
                                (ts, d_model))
    w = w_ref[...]                                                # model dtype

    for b in range(n_batch):                 # static unroll; B is small
        # MXU matmul in the incoming dtype (bf16 in production), f32 accum.
        h = jnp.dot(x_ref[b], w, preferred_element_type=jnp.float32)
        h = h + bias

        # Exact erf-GELU (torch nn.GELU() default).  If profiling shows the
        # VALU saturating, switch to the tanh approximation (runs on EUP).
        h = 0.5 * h * (1.0 + jax.lax.erf(h * 0.7071067811865475))

        # Two-pass LayerNorm over the last dim (row-local: padded/garbage
        # rows never contaminate valid rows).
        mean = jnp.mean(h, axis=-1, keepdims=True)
        var = jnp.mean(jnp.square(h - mean), axis=-1, keepdims=True)
        h = (h - mean) * jax.lax.rsqrt(var + eps)
        h = h * gamma + beta

        # Query rows carry the raw cls token instead of an embedded feature.
        h = jnp.where(is_feat, h, cls_rows)

        # Fused channel-concat + sequence-concat + transpose(0, 1):
        #   out[s, b, :d_model] = embedded feature (or cls token)
        #   out[s, b, d_model:] = time encoding for that (s, b) row
        o_ref[:, b, :d_model] = h.astype(o_ref.dtype)
        o_ref[:, b, d_model:] = te_ref[b].astype(o_ref.dtype)


def visual_feature_encoding_pallas(x, te, params, *, ts=None, eps=1e-5,
                                    out_dtype=None):
    """x: [B, num_feats, d_in], te: [B, num_feats + num_q, t_dim]
    -> [num_feats + num_q, B, d_model + t_dim] (already transposed)."""
    batch, nf, d_in = x.shape
    s_total, t_dim = te.shape[1], te.shape[2]
    w = params["w"]
    d_model = w.shape[1]
    d_out = d_model + t_dim
    # Explicit output dtype (review item): default = model/x dtype.
    out_dtype = x.dtype if out_dtype is None else out_dtype

    # Sequence tile: multiple of 8 sublanes; target ~512 output rows per
    # block (ts * B) -- v6e likes 512-1024, v7x (64 MiB VMEM) <= ~512.
    if ts is None:
        ts = max(8, _round_up(512 // max(batch, 1), 8))
    ts = max(8, min(_round_up(ts, 8), _round_up(s_total, 8)))
    # v7x has 2 TensorCores: make sure the "parallel" axis has >= 2 blocks.
    while pl.cdiv(s_total, ts) < 2 and ts > 8:
        ts = max(8, _round_up(ts // 2, 8))
    grid = (pl.cdiv(s_total, ts),)
    x_blocks = pl.cdiv(nf, ts)

    cls2d = params["visual_action_cls"].reshape(1, d_model)   # tiny

    # VMEM budget: double-buffered x/te/out blocks + (double-buffered but
    # grid-invariant) params, with headroom.  Clamped to v7x physical VMEM.
    in_b = jnp.dtype(x.dtype).itemsize
    te_b = jnp.dtype(te.dtype).itemsize
    out_b = jnp.dtype(out_dtype).itemsize
    w_b = jnp.dtype(w.dtype).itemsize
    vmem_needed = 2 * (batch * ts * d_in * in_b
                       + batch * ts * t_dim * te_b
                       + ts * batch * d_out * out_b
                       + d_in * d_model * w_b
                       + 4 * d_model * 4)
    vmem_limit = int(min(max(2 * vmem_needed + (2 << 20), 32 << 20), 64 << 20))

    kernel = functools.partial(_fused_encoding_kernel, d_model=d_model,
                               num_feats=nf, ts=ts, eps=eps)
    return pl.pallas_call(
        kernel,
        out_shape=jax.ShapeDtypeStruct((s_total, batch, d_out), out_dtype),
        grid_spec=pltpu.PrefetchScalarGridSpec(
            num_scalar_prefetch=0,
            grid=grid,
            in_specs=[
                # x tile: all of B, ts seq rows.  For blocks past num_feats the
                # block index is clamped (data is masked off by the row mask).
                pl.BlockSpec((batch, ts, d_in),
                             lambda si: (0, jnp.minimum(si, x_blocks - 1), 0)),
                pl.BlockSpec((d_in, d_model), lambda si: (0, 0)),   # weight
                pl.BlockSpec((1, d_model), lambda si: (0, 0)),      # bias
                pl.BlockSpec((1, d_model), lambda si: (0, 0)),      # ln gamma
                pl.BlockSpec((1, d_model), lambda si: (0, 0)),      # ln beta
                pl.BlockSpec((1, d_model), lambda si: (0, 0)),      # cls token
                pl.BlockSpec((batch, ts, t_dim), lambda si: (0, si, 0)),  # te
            ],
            out_specs=pl.BlockSpec((ts, batch, d_out), lambda si: (si, 0, 0)),
        ),
        compiler_params=pltpu.CompilerParams(
            dimension_semantics=("parallel",),
            vmem_limit_bytes=vmem_limit),
    )(x, w, params["b"], params["ln_gamma"], params["ln_beta"], cls2d, te)


# ----------------------------------------------------------------------------
# Full forward pass (matches VisualFeatureEncoding.forward in eval mode)
# ----------------------------------------------------------------------------
def visual_feature_encoding_forward(params, inputs, time_encodings,
                                    num_v_queries, num_a_queries, num_feats):
    del num_a_queries  # unused by the PyTorch forward
    x = inputs[0]                                   # [B, num_feats, d_in]
    assert x.shape[1] == num_feats
    assert time_encodings.shape[1] == num_feats + num_v_queries
    # Entire forward (embed + concat + cls rows + transpose) is one kernel.
    return visual_feature_encoding_pallas(x, time_encodings, params)


# ----------------------------------------------------------------------------
# Pure-JAX reference (for correctness check) + deterministic parameter init
# ----------------------------------------------------------------------------
def _forward_reference(params, inputs, time_encodings,
                       num_v_queries, num_a_queries, num_feats):
    del num_a_queries
    x = inputs[0]
    batch_size = x.shape[0]
    d_model = params["w"].shape[1]
    h = x @ params["w"] + params["b"]
    h = 0.5 * h * (1.0 + jax.lax.erf(h * 0.7071067811865475))
    mean = jnp.mean(h, axis=-1, keepdims=True)
    var = jnp.mean((h - mean) ** 2, axis=-1, keepdims=True)
    h = (h - mean) * jax.lax.rsqrt(var + 1e-5)
    h = h * params["ln_gamma"] + params["ln_beta"]
    seq = jnp.concatenate([h, time_encodings[:, :num_feats, :]], axis=-1)
    cls = jnp.broadcast_to(params["visual_action_cls"],
                           (batch_size, num_v_queries, d_model))
    cls = jnp.concatenate([cls, time_encodings[:, num_feats:, :]], axis=-1)
    seq = jnp.concatenate([seq, cls], axis=1)
    return jnp.transpose(seq, (1, 0, 2))


def init_params(key, visual_input_dim, d_model, dtype=jnp.float32):
    # Init in the model dtype (bf16 for production) so no per-call casts are
    # needed and weight/x DMA bytes are halved on the mem-bound kernel.
    k_w, k_b, k_cls = jax.random.split(key, 3)
    return {
        "w": (0.02 * jax.random.normal(k_w, (visual_input_dim, d_model),
                                       jnp.float32)).astype(dtype),
        "b": (0.02 * jax.random.normal(k_b, (1, d_model),
                                       jnp.float32)).astype(dtype),
        "ln_gamma": jnp.ones((1, d_model), dtype),
        "ln_beta": jnp.zeros((1, d_model), dtype),
        # normal_(std=0.01), shape (1, 1, d_model)
        "visual_action_cls": (0.01 * jax.random.normal(
            k_cls, (1, 1, d_model), jnp.float32)).astype(dtype),
    }


if __name__ == "__main__":
    # small but lane-aligned shapes consistent with the module
    batch = 2
    num_feats = 8          # module default is 50; small for the demo
    visual_input_dim = 128
    d_model = 128
    t_dim = 128            # time-encoding channel dim
    num_v_queries = 4
    num_a_queries = 4      # unused by forward

    key = jax.random.PRNGKey(0)
    k_p, k_x, k_t = jax.random.split(key, 3)
    params = init_params(k_p, visual_input_dim, d_model, jnp.float32)

    x = jax.random.normal(k_x, (batch, num_feats, visual_input_dim),
                          jnp.float32)
    time_encodings = jax.random.normal(
        k_t, (batch, num_feats + num_v_queries, t_dim), jnp.float32)

    out = visual_feature_encoding_forward(
        params, [x], time_encodings, num_v_queries, num_a_queries, num_feats)
    out = jax.block_until_ready(out)

    expected_shape = (num_feats + num_v_queries, batch, d_model + t_dim)
    assert out.shape == expected_shape, (out.shape, expected_shape)

    ref = _forward_reference(
        params, [x], time_encodings, num_v_queries, num_a_queries, num_feats)
    ref = jax.block_until_ready(ref)
    assert jnp.allclose(out, ref, rtol=1e-4, atol=1e-4), (
        float(jnp.max(jnp.abs(out - ref))))

    print("KERNEL_OK")
</pallas_src>

<mosaic_0001>
module attributes {stable_mosaic.version = 11 : i64} {
  func.func @_fused_encoding_kernel(%arg0: i32, %arg1: memref<2x8x128xf32, #tpu.memory_space<vmem>>, %arg2: memref<128x128xf32, #tpu.memory_space<vmem>>, %arg3: memref<1x128xf32, #tpu.memory_space<vmem>>, %arg4: memref<1x128xf32, #tpu.memory_space<vmem>>, %arg5: memref<1x128xf32, #tpu.memory_space<vmem>>, %arg6: memref<1x128xf32, #tpu.memory_space<vmem>>, %arg7: memref<2x8x128xf32, #tpu.memory_space<vmem>>, %arg8: memref<8x2x256xf32, #tpu.memory_space<vmem>>) attributes {dimension_semantics = [#tpu.dimension_semantics<parallel>], iteration_bounds = array<i64: 2>, scalar_prefetch = 0 : i64, scratch_operands = 0 : i64, tpu.core_type = #tpu.core_type<tc>, window_params = [{transform_indices = @transform_0, window_bounds = array<i64: 2, 8, 128>}, {pipeline_mode = #tpu.pipeline_mode<synchronous>, transform_indices = @transform_1, window_bounds = array<i64: 128, 128>}, {pipeline_mode = #tpu.pipeline_mode<synchronous>, transform_indices = @transform_2, window_bounds = array<i64: 1, 128>}, {pipeline_mode = #tpu.pipeline_mode<synchronous>, transform_indices = @transform_3, window_bounds = array<i64: 1, 128>}, {pipeline_mode = #tpu.pipeline_mode<synchronous>, transform_indices = @transform_4, window_bounds = array<i64: 1, 128>}, {pipeline_mode = #tpu.pipeline_mode<synchronous>, transform_indices = @transform_5, window_bounds = array<i64: 1, 128>}, {transform_indices = @transform_6, window_bounds = array<i64: 2, 8, 128>}, {transform_indices = @transform_7, window_bounds = array<i64: 8, 2, 256>}]} {
    %c8_i32 = arith.constant 8 : i32
    %0 = arith.muli %arg0, %c8_i32 : i32
    %1 = tpu.iota {dimensions = array<i32: 0>} : vector<8x1xi32>
    %2 = vector.broadcast %0 : i32 to vector<8x1xi32>
    %3 = arith.addi %2, %1 : vector<8x1xi32>
    %c8_i32_0 = arith.constant 8 : i32
    %4 = vector.broadcast %c8_i32_0 : i32 to vector<8x1xi32>
    %5 = arith.cmpi slt, %3, %4 : vector<8x1xi32>
    %c0 = arith.constant 0 : index
    %c0_1 = arith.constant 0 : index
    %6 = vector.load %arg3[%c0, %c0_1] : memref<1x128xf32, #tpu.memory_space<vmem>>, vector<1x128xf32>
    %c0_2 = arith.constant 0 : index
    %c0_3 = arith.constant 0 : index
    %7 = vector.load %arg4[%c0_2, %c0_3] : memref<1x128xf32, #tpu.memory_space<vmem>>, vector<1x128xf32>
    %c0_4 = arith.constant 0 : index
    %c0_5 = arith.constant 0 : index
    %8 = vector.load %arg5[%c0_4, %c0_5] : memref<1x128xf32, #tpu.memory_space<vmem>>, vector<1x128xf32>
    %c0_6 = arith.constant 0 : index
    %c0_7 = arith.constant 0 : index
    %9 = vector.load %arg6[%c0_6, %c0_7] : memref<1x128xf32, #tpu.memory_space<vmem>>, vector<1x128xf32>
    %10 = vector.shape_cast %9 : vector<1x128xf32> to vector<1x128xf32>
    %11 = vector.broadcast %10 : vector<1x128xf32> to vector<8x128xf32>
    %c0_8 = arith.constant 0 : index
    %c0_9 = arith.constant 0 : index
    %12 = vector.load %arg2[%c0_8, %c0_9] : memref<128x128xf32, #tpu.memory_space<vmem>>, vector<128x128xf32>
    %c0_10 = arith.constant 0 : index
    %c0_11 = arith.constant 0 : index
    %c0_12 = arith.constant 0 : index
    %13 = vector.load %arg1[%c0_10, %c0_11, %c0_12] : memref<2x8x128xf32, #tpu.memory_space<vmem>>, vector<1x8x128xf32>
    %14 = vector.shape_cast %13 : vector<1x8x128xf32> to vector<8x128xf32>
    %cst = arith.constant dense<0.000000e+00> : vector<8x128xf32>
    %15 = tpu.matmul %14, %12, %cst {dimension_numbers = #tpu.dot_dimension_numbers<[1], [0], [0], [1], [0, 0, 1, 1], [], []>} : vector<8x128xf32>, vector<128x128xf32>, vector<8x128xf32> -> vector<8x128xf32>
    %16 = vector.broadcast %6 : vector<1x128xf32> to vector<8x128xf32>
    %17 = arith.addf %15, %16 : vector<8x128xf32>
    %cst_13 = arith.constant 5.000000e-01 : f32
    %18 = vector.broadcast %cst_13 : f32 to vector<8x128xf32>
    %19 = arith.mulf %18, %17 : vector<8x128xf32>
    %cst_14 = arith.constant 0.707106769 : f32
    %20 = vector.broadcast %cst_14 : f32 to vector<8x128xf32>
    %21 = arith.mulf %17, %20 : vector<8x128xf32>
    %22 = math.erf %21 : vector<8x128xf32>
    %cst_15 = arith.constant 1.000000e+00 : f32
    %23 = vector.broadcast %cst_15 : f32 to vector<8x128xf32>
    %24 = arith.addf %23, %22 : vector<8x128xf32>
    %25 = arith.mulf %19, %24 : vector<8x128xf32>
    %cst_16 = arith.constant dense<0.000000e+00> : vector<8xf32>
    %26 = vector.multi_reduction <add>, %25, %cst_16 [1] : vector<8x128xf32> to vector<8xf32>
    %27 = vector.shape_cast %26 : vector<8xf32> to vector<8x1xf32>
    %cst_17 = arith.constant 1.280000e+02 : f32
    %28 = vector.broadcast %cst_17 : f32 to vector<8x1xf32>
    %29 = arith.divf %27, %28 : vector<8x1xf32>
    %30 = vector.broadcast %29 : vector<8x1xf32> to vector<8x128xf32>
    %31 = arith.subf %25, %30 : vector<8x128xf32>
    %32 = arith.mulf %31, %31 : vector<8x128xf32>
    %cst_18 = arith.constant dense<0.000000e+00> : vector<8xf32>
    %33 = vector.multi_reduction <add>, %32, %cst_18 [1] : vector<8x128xf32> to vector<8xf32>
    %34 = vector.shape_cast %33 : vector<8xf32> to vector<8x1xf32>
    %cst_19 = arith.constant 1.280000e+02 : f32
    %35 = vector.broadcast %cst_19 : f32 to vector<8x1xf32>
    %36 = arith.divf %34, %35 : vector<8x1xf32>
    %37 = vector.broadcast %29 : vector<8x1xf32> to vector<8x128xf32>
    %38 = arith.subf %25, %37 : vector<8x128xf32>
    %cst_20 = arith.constant 9.99999974E-6 : f32
    %39 = vector.broadcast %cst_20 : f32 to vector<8x1xf32>
    %40 = arith.addf %36, %39 : vector<8x1xf32>
    %41 = math.rsqrt %40 : vector<8x1xf32>
    %42 = vector.broadcast %41 : vector<8x1xf32> to vector<8x128xf32>
    %43 = arith.mulf %38, %42 : vector<8x128xf32>
    %44 = vector.broadcast %7 : vector<1x128xf32> to vector<8x128xf32>
    %45 = arith.mulf %43, %44 : vector<8x128xf32>
    %46 = vector.broadcast %8 : vector<1x128xf32> to vector<8x128xf32>
    %47 = arith.addf %45, %46 : vector<8x128xf32>
    %48 = vector.shape_cast %5 : vector<8x1xi1> to vector<8x1xi1>
    %49 = vector.broadcast %48 : vector<8x1xi1> to vector<8x128xi1>
    %50 = arith.select %49, %47, %11 : vector<8x128xi1>, vector<8x128xf32>
    %c0_21 = arith.constant 0 : index
    %c0_22 = arith.constant 0 : index
    %c0_23 = arith.constant 0 : index
    %51 = vector.load %arg8[%c0_21, %c0_22, %c0_23] : memref<8x2x256xf32, #tpu.memory_space<vmem>>, vector<8x1x128xf32>
    %52 = vector.shape_cast %51 : vector<8x1x128xf32> to vector<8x128xf32>
    %53 = vector.shape_cast %50 : vector<8x128xf32> to vector<8x1x128xf32>
    tpu.vector_store %arg8[%c0_21, %c0_22, %c0_23], %53 {strides = array<i32>} : memref<8x2x256xf32, #tpu.memory_space<vmem>>, vector<8x1x128xf32>,
    %c0_24 = arith.constant 0 : index
    %c0_25 = arith.constant 0 : index
    %c0_26 = arith.constant 0 : index
    %54 = vector.load %arg7[%c0_24, %c0_25, %c0_26] : memref<2x8x128xf32, #tpu.memory_space<vmem>>, vector<1x8x128xf32>
    %55 = vector.shape_cast %54 : vector<1x8x128xf32> to vector<8x128xf32>
    %c0_27 = arith.constant 0 : index
    %c0_28 = arith.constant 0 : index
    %c128 = arith.constant 128 : index
    %56 = vector.load %arg8[%c0_27, %c0_28, %c128] : memref<8x2x256xf32, #tpu.memory_space<vmem>>, vector<8x1x128xf32>
    %57 = vector.shape_cast %56 : vector<8x1x128xf32> to vector<8x128xf32>
    %58 = vector.shape_cast %55 : vector<8x128xf32> to vector<8x1x128xf32>
    tpu.vector_store %arg8[%c0_27, %c0_28, %c128], %58 {strides = array<i32>} : memref<8x2x256xf32, #tpu.memory_space<vmem>>, vector<8x1x128xf32>,
    %c1 = arith.constant 1 : index
    %c0_29 = arith.constant 0 : index
    %c0_30 = arith.constant 0 : index
    %59 = vector.load %arg1[%c1, %c0_29, %c0_30] : memref<2x8x128xf32, #tpu.memory_space<vmem>>, vector<1x8x128xf32>
    %60 = vector.shape_cast %59 : vector<1x8x128xf32> to vector<8x128xf32>
    %cst_31 = arith.constant dense<0.000000e+00> : vector<8x128xf32>
    %61 = tpu.matmul %60, %12, %cst_31 {dimension_numbers = #tpu.dot_dimension_numbers<[1], [0], [0], [1], [0, 0, 1, 1], [], []>} : vector<8x128xf32>, vector<128x128xf32>, vector<8x128xf32> -> vector<8x128xf32>
    %62 = vector.broadcast %6 : vector<1x128xf32> to vector<8x128xf32>
    %63 = arith.addf %61, %62 : vector<8x128xf32>
    %cst_32 = arith.constant 5.000000e-01 : f32
    %64 = vector.broadcast %cst_32 : f32 to vector<8x128xf32>
    %65 = arith.mulf %64, %63 : vector<8x128xf32>
    %cst_33 = arith.constant 0.707106769 : f32
    %66 = vector.broadcast %cst_33 : f32 to vector<8x128xf32>
    %67 = arith.mulf %63, %66 : vector<8x128xf32>
    %68 = math.erf %67 : vector<8x128xf32>
    %cst_34 = arith.constant 1.000000e+00 : f32
    %69 = vector.broadcast %cst_34 : f32 to vector<8x128xf32>
    %70 = arith.addf %69, %68 : vector<8x128xf32>
    %71 = arith.mulf %65, %70 : vector<8x128xf32>
    %cst_35 = arith.constant dense<0.000000e+00> : vector<8xf32>
    %72 = vector.multi_reduction <add>, %71, %cst_35 [1] : vector<8x128xf32> to vector<8xf32>
    %73 = vector.shape_cast %72 : vector<8xf32> to vector<8x1xf32>
    %cst_36 = arith.constant 1.280000e+02 : f32
    %74 = vector.broadcast %cst_36 : f32 to vector<8x1xf32>
    %75 = arith.divf %73, %74 : vector<8x1xf32>
    %76 = vector.broadcast %75 : vector<8x1xf32> to vector<8x128xf32>
    %77 = arith.subf %71, %76 : vector<8x128xf32>
    %78 = arith.mulf %77, %77 : vector<8x128xf32>
    %cst_37 = arith.constant dense<0.000000e+00> : vector<8xf32>
    %79 = vector.multi_reduction <add>, %78, %cst_37 [1] : vector<8x128xf32> to vector<8xf32>
    %80 = vector.shape_cast %79 : vector<8xf32> to vector<8x1xf32>
    %cst_38 = arith.constant 1.280000e+02 : f32
    %81 = vector.broadcast %cst_38 : f32 to vector<8x1xf32>
    %82 = arith.divf %80, %81 : vector<8x1xf32>
    %83 = vector.broadcast %75 : vector<8x1xf32> to vector<8x128xf32>
    %84 = arith.subf %71, %83 : vector<8x128xf32>
    %cst_39 = arith.constant 9.99999974E-6 : f32
    %85 = vector.broadcast %cst_39 : f32 to vector<8x1xf32>
    %86 = arith.addf %82, %85 : vector<8x1xf32>
    %87 = math.rsqrt %86 : vector<8x1xf32>
    %88 = vector.broadcast %87 : vector<8x1xf32> to vector<8x128xf32>
    %89 = arith.mulf %84, %88 : vector<8x128xf32>
    %90 = vector.broadcast %7 : vector<1x128xf32> to vector<8x128xf32>
    %91 = arith.mulf %89, %90 : vector<8x128xf32>
    %92 = vector.broadcast %8 : vector<1x128xf32> to vector<8x128xf32>
    %93 = arith.addf %91, %92 : vector<8x128xf32>
    %94 = vector.shape_cast %5 : vector<8x1xi1> to vector<8x1xi1>
    %95 = vector.broadcast %94 : vector<8x1xi1> to vector<8x128xi1>
    %96 = arith.select %95, %93, %11 : vector<8x128xi1>, vector<8x128xf32>
    %c0_40 = arith.constant 0 : index
    %c1_41 = arith.constant 1 : index
    %c0_42 = arith.constant 0 : index
    %97 = vector.load %arg8[%c0_40, %c1_41, %c0_42] : memref<8x2x256xf32, #tpu.memory_space<vmem>>, vector<8x1x128xf32>
    %98 = vector.shape_cast %97 : vector<8x1x128xf32> to vector<8x128xf32>
    %99 = vector.shape_cast %96 : vector<8x128xf32> to vector<8x1x128xf32>
    tpu.vector_store %arg8[%c0_40, %c1_41, %c0_42], %99 {strides = array<i32>} : memref<8x2x256xf32, #tpu.memory_space<vmem>>, vector<8x1x128xf32>,
    %c1_43 = arith.constant 1 : index
    %c0_44 = arith.constant 0 : index
    %c0_45 = arith.constant 0 : index
    %100 = vector.load %arg7[%c1_43, %c0_44, %c0_45] : memref<2x8x128xf32, #tpu.memory_space<vmem>>, vector<1x8x128xf32>
    %101 = vector.shape_cast %100 : vector<1x8x128xf32> to vector<8x128xf32>
    %c0_46 = arith.constant 0 : index
    %c1_47 = arith.constant 1 : index
    %c128_48 = arith.constant 128 : index
    %102 = vector.load %arg8[%c0_46, %c1_47, %c128_48] : memref<8x2x256xf32, #tpu.memory_space<vmem>>, vector<8x1x128xf32>
    %103 = vector.shape_cast %102 : vector<8x1x128xf32> to vector<8x128xf32>
    %104 = vector.shape_cast %101 : vector<8x128xf32> to vector<8x1x128xf32>
    tpu.vector_store %arg8[%c0_46, %c1_47, %c128_48], %104 {strides = array<i32>} : memref<8x2x256xf32, #tpu.memory_space<vmem>>, vector<8x1x128xf32>,
    return
  }
  func.func @transform_0(%arg0: i32) -> (i32, i32, i32) {
    %c0_i32 = arith.constant 0 : i32
    %0 = arith.minsi %arg0, %c0_i32 : i32
    %c0_i32_0 = arith.constant 0 : i32
    %c0_i32_1 = arith.constant 0 : i32
    %c0_i32_2 = arith.constant 0 : i32
    return %c0_i32_0, %0, %c0_i32_1 : i32, i32, i32
  }
  func.func @transform_1(%arg0: i32) -> (i32, i32) {
    %c0_i32 = arith.constant 0 : i32
    %c0_i32_0 = arith.constant 0 : i32
    %c0_i32_1 = arith.constant 0 : i32
    return %c0_i32, %c0_i32_0 : i32, i32
  }
  func.func @transform_2(%arg0: i32) -> (i32, i32) {
    %c0_i32 = arith.constant 0 : i32
    %c0_i32_0 = arith.constant 0 : i32
    %c0_i32_1 = arith.constant 0 : i32
    return %c0_i32, %c0_i32_0 : i32, i32
  }
  func.func @transform_3(%arg0: i32) -> (i32, i32) {
    %c0_i32 = arith.constant 0 : i32
    %c0_i32_0 = arith.constant 0 : i32
    %c0_i32_1 = arith.constant 0 : i32
    return %c0_i32, %c0_i32_0 : i32, i32
  }
  func.func @transform_4(%arg0: i32) -> (i32, i32) {
    %c0_i32 = arith.constant 0 : i32
    %c0_i32_0 = arith.constant 0 : i32
    %c0_i32_1 = arith.constant 0 : i32
    return %c0_i32, %c0_i32_0 : i32, i32
  }
  func.func @transform_5(%arg0: i32) -> (i32, i32) {
    %c0_i32 = arith.constant 0 : i32
    %c0_i32_0 = arith.constant 0 : i32
    %c0_i32_1 = arith.constant 0 : i32
    return %c0_i32, %c0_i32_0 : i32, i32
  }
  func.func @transform_6(%arg0: i32) -> (i32, i32, i32) {
    %c0_i32 = arith.constant 0 : i32
    %c0_i32_0 = arith.constant 0 : i32
    %c0_i32_1 = arith.constant 0 : i32
    return %c0_i32, %arg0, %c0_i32_0 : i32, i32, i32
  }
  func.func @transform_7(%arg0: i32) -> (i32, i32, i32) {
    %c0_i32 = arith.constant 0 : i32
    %c0_i32_0 = arith.constant 0 : i32
    %c0_i32_1 = arith.constant 0 : i32
    return %arg0, %c0_i32, %c0_i32_0 : i32, i32, i32
  }
}

</mosaic_0001>

<llo_original>
// kernel: tpu_custom_call.1
$region0: #{tpu_custom_call.1}
  #allocation0 [shape = 'u32[]', space=smem, size = 0x4, offset = 0x4, fixed_abs, tag = 'smem constant byte address 0x4 - core index']
  #allocation1 [shape = 'u32[144,128]{1,0:T(1,128)}', space=vmem, size = 0x12000, scoped, tag = 'internal scratch']
  %s0 = inlined_call_operand.vmem [shape: f32[2,8,128], index: 0, kind: input, shape index: {}]
  %s1 = inlined_call_operand.hbm [shape: f32[128,128], index: 1, kind: input, shape index: {}]
  %s2 = inlined_call_operand.vmem [shape: f32[1,128], index: 2, kind: input, shape index: {}]
  %s3 = inlined_call_operand.vmem [shape: f32[1,128], index: 3, kind: input, shape index: {}]
  %s4 = inlined_call_operand.vmem [shape: f32[1,128], index: 4, kind: input, shape index: {}]
  %s5 = inlined_call_operand.vmem [shape: f32[1,128], index: 5, kind: input, shape index: {}]
  %s6 = inlined_call_operand.vmem [shape: f32[2,12,128], index: 6, kind: input, shape index: {}]
  %s7 = inlined_call_operand.hbm [shape: f32[12,2,256], index: 7, kind: output, shape index: {}]
  %s8 = sld [smem:[#allocation0]]
  $region103: #{tpu_custom_call.1} parent=0
    _
  %s10 = ssub.s32 1, %s8
  %s11 = scalar_select 0, %s10, %s8
  $region1: #{tpu_custom_call.1} parent=0
    #allocation2 [shape = 'u8[65536]{0}', space=vmem, size = 0x10000, scoped, tag = 'input window, operand 1, single buffered']
    #allocation3 [shape = 's32[2]{0}', space=sflag, size = 0x8, scoped, tag = 'scoped memory for tpu_custom_call.1']
    #allocation4 [shape = 's32[2]{0}', space=sflag, size = 0x8, scoped, tag = 'scoped memory for tpu_custom_call.1']
    #allocation5 [shape = 'u8[16384]{0}', space=vmem, size = 0x4000, scoped, tag = 'input window, operand 6']
    #allocation6 [shape = 'u8[32768]{0}', space=vmem, size = 0x8000, scoped, tag = 'output window, operand 0']
    %12 = vsyncpa [#allocation3], 0
    %13 = vsyncpa [#allocation4], 0
    %s14 = scalar_lea.sflag [#allocation4], 1
    %15 = vsyncpa %s14, 0
    loop: start=0, step=1, limit=4
    $region2: #{tpu_custom_call.1} parent=1 // loop_pre_header
      _
    $region3: #{tpu_custom_call.1} parent=1 // loop_header
      %s17 = sphi 0, %s21
      %p18 = scmp.ge.s32.totalorder %s17, 4
      %s31 = sphi 0, %s33
      %s34 = sphi 0, %s31
      %s35 = sphi 0, %s34
      %s51 = sphi 0, %s35
      %s55 = sphi 0, %s55
      %s57 = sphi 0, %s55
      %s58 = sphi 0, %s57
      %s72 = sphi 0, %s58
      %s76 = sphi 0, %s76
      %s78 = sphi 0, %s76
      %s79 = sphi 0, %s78
      %s93 = sphi 0, %s79
      %s97 = sphi 0, %s97
      %s99 = sphi 0, %s97
      %s100 = sphi 0, %s99
      %s114 = sphi 0, %s100
      %s118 = sphi 0, %s118
      %s120 = sphi 0, %s118
      %s121 = sphi 0, %s120
      %s135 = sphi 0, %s121
      %s139 = sphi 0, %s139
      %s141 = sphi 0, %s139
      %s142 = sphi 0, %s141
      %s156 = sphi 0, %s142
      %s162 = sphi 0, %s164
      %s165 = sphi 0, %s162
      %s166 = sphi 0, %s165
      %s182 = sphi 0, %s166
      %s188 = sphi 0, %s190
      %s191 = sphi 0, %s188
      %s192 = sphi 0, %s191
      %s208 = sphi 0, %s192
    $region4: #{tpu_custom_call.1} parent=1 // loop_header_branch
      %20 = sbr.rel (%p18) target = $region8
    $region5: #{tpu_custom_call.1} parent=1 // loop_body
      %s22 = ssub.s32 %s17, 1
      %s23 = ssub.s32 %s17, 2
      %s24 = sadd.s32 %s17, 1
      %p25 = scmp.lt.s32.totalorder %s17, 0
      %s26 = scalar_select %p25, %s17, 0
      %p27 = scmp.lt.s32.totalorder %s24, 0
      %s28 = scalar_select %p27, %s24, 0
      %s29 = ssub.s32 %s26, %s28
      %p30 = scmp.eq.s32.totalorder %s29, 0
      %s32 = sadd.s32 %s31, 1
      %s33 = scalar_select %p30, %s31, %s32
      %p36 = pneg %p30
      %p37 = scmp.eq.s32.totalorder %s17, 1
      %p38 = por %p36, %p37
      %p39 = scmp.ne.s32.totalorder %s31, %s34
      %p40 = scmp.eq.s32.totalorder %s17, 0
      %p41 = por %p39, %p40
      %p42 = scmp.ne.s32.totalorder %s31, %s34
      %p43 = scmp.eq.s32.totalorder %s22, 1
      %p44 = por %p42, %p43
      %p45 = scmp.ne.s32.totalorder %s34, %s35
      %p46 = scmp.eq.s32.totalorder %s22, 0
      %p47 = por %p45, %p46
      %p48 = scmp.ne.s32.totalorder %s34, %s35
      %p49 = scmp.eq.s32.totalorder %s23, 1
      %p50 = por %p48, %p49
      %p52 = scmp.ne.s32.totalorder %s35, %s51
      %p53 = scmp.eq.s32.totalorder %s23, 0
      %p54 = por %p52, %p53
      %s56 = sadd.s32 %s55, 1
      %p59 = scmp.eq.s32.totalorder %s17, 1
      %p60 = scmp.ne.s32.totalorder %s55, %s57
      %p61 = scmp.eq.s32.totalorder %s17, 0
      %p62 = por %p60, %p61
      %p63 = scmp.ne.s32.totalorder %s55, %s57
      %p64 = scmp.eq.s32.totalorder %s22, 1
      %p65 = por %p63, %p64
      %p66 = scmp.ne.s32.totalorder %s57, %s58
      %p67 = scmp.eq.s32.totalorder %s22, 0
      %p68 = por %p66, %p67
      %p69 = scmp.ne.s32.totalorder %s57, %s58
      %p70 = scmp.eq.s32.totalorder %s23, 1
      %p71 = por %p69, %p70
      %p73 = scmp.ne.s32.totalorder %s58, %s72
      %p74 = scmp.eq.s32.totalorder %s23, 0
      %p75 = por %p73, %p74
      %s77 = sadd.s32 %s76, 1
      %p80 = scmp.eq.s32.totalorder %s17, 1
      %p81 = scmp.ne.s32.totalorder %s76, %s78
      %p82 = scmp.eq.s32.totalorder %s17, 0
      %p83 = por %p81, %p82
      %p84 = scmp.ne.s32.totalorder %s76, %s78
      %p85 = scmp.eq.s32.totalorder %s22, 1
      %p86 = por %p84, %p85
      %p87 = scmp.ne.s32.totalorder %s78, %s79
      %p88 = scmp.eq.s32.totalorder %s22, 0
      %p89 = por %p87, %p88
      %p90 = scmp.ne.s32.totalorder %s78, %s79
      %p91 = scmp.eq.s32.totalorder %s23, 1
      %p92 = por %p90, %p91
      %p94 = scmp.ne.s32.totalorder %s79, %s93
      %p95 = scmp.eq.s32.totalorder %s23, 0
      %p96 = por %p94, %p95
      %s98 = sadd.s32 %s97, 1
      %p101 = scmp.eq.s32.totalorder %s17, 1
      %p102 = scmp.ne.s32.totalorder %s97, %s99
      %p103 = scmp.eq.s32.totalorder %s17, 0
      %p104 = por %p102, %p103
      %p105 = scmp.ne.s32.totalorder %s97, %s99
      %p106 = scmp.eq.s32.totalorder %s22, 1
      %p107 = por %p105, %p106
      %p108 = scmp.ne.s32.totalorder %s99, %s100
      %p109 = scmp.eq.s32.totalorder %s22, 0
      %p110 = por %p108, %p109
      %p111 = scmp.ne.s32.totalorder %s99, %s100
      %p112 = scmp.eq.s32.totalorder %s23, 1
      %p113 = por %p111, %p112
      %p115 = scmp.ne.s32.totalorder %s100, %s114
      %p116 = scmp.eq.s32.totalorder %s23, 0
      %p117 = por %p115, %p116
      %s119 = sadd.s32 %s118, 1
      %p122 = scmp.eq.s32.totalorder %s17, 1
      %p123 = scmp.ne.s32.totalorder %s118, %s120
      %p124 = scmp.eq.s32.totalorder %s17, 0
      %p125 = por %p123, %p124
      %p126 = scmp.ne.s32.totalorder %s118, %s120
      %p127 = scmp.eq.s32.totalorder %s22, 1
      %p128 = por %p126, %p127
      %p129 = scmp.ne.s32.totalorder %s120, %s121
      %p130 = scmp.eq.s32.totalorder %s22, 0
      %p131 = por %p129, %p130
      %p132 = scmp.ne.s32.totalorder %s120, %s121
      %p133 = scmp.eq.s32.totalorder %s23, 1
      %p134 = por %p132, %p133
      %p136 = scmp.ne.s32.totalorder %s121, %s135
      %p137 = scmp.eq.s32.totalorder %s23, 0
      %p138 = por %p136, %p137
      %s140 = sadd.s32 %s139, 1
      %p143 = scmp.eq.s32.totalorder %s17, 1
      %p144 = scmp.ne.s32.totalorder %s139, %s141
      %p145 = scmp.eq.s32.totalorder %s17, 0
      %p146 = por %p144, %p145
      %p147 = scmp.ne.s32.totalorder %s139, %s141
      %p148 = scmp.eq.s32.totalorder %s22, 1
      %p149 = por %p147, %p148
      %p150 = scmp.ne.s32.totalorder %s141, %s142
      %p151 = scmp.eq.s32.totalorder %s22, 0
      %p152 = por %p150, %p151
      %p153 = scmp.ne.s32.totalorder %s141, %s142
      %p154 = scmp.eq.s32.totalorder %s23, 1
      %p155 = por %p153, %p154
      %p157 = scmp.ne.s32.totalorder %s142, %s156
      %p158 = scmp.eq.s32.totalorder %s23, 0
      %p159 = por %p157, %p158
      %s160 = ssub.s32 %s17, %s24
      %p161 = scmp.eq.s32.totalorder %s160, 0
      %s163 = sadd.s32 %s162, 1
      %s164 = scalar_select %p161, %s162, %s163
      %p167 = pneg %p161
      %p168 = scmp.eq.s32.totalorder %s17, 1
      %p169 = por %p167, %p168
      %p170 = scmp.ne.s32.totalorder %s162, %s165
      %p171 = scmp.eq.s32.totalorder %s17, 0
      %p172 = por %p170, %p171
      %p173 = scmp.ne.s32.totalorder %s162, %s165
      %p174 = scmp.eq.s32.totalorder %s22, 1
      %p175 = por %p173, %p174
      %p176 = scmp.ne.s32.totalorder %s165, %s166
      %p177 = scmp.eq.s32.totalorder %s22, 0
      %p178 = por %p176, %p177
      %p179 = scmp.ne.s32.totalorder %s165, %s166
      %p180 = scmp.eq.s32.totalorder %s23, 1
      %p181 = por %p179, %p180
      %p183 = scmp.ne.s32.totalorder %s166, %s182
      %p184 = scmp.eq.s32.totalorder %s23, 0
      %p185 = por %p183, %p184
      %s186 = ssub.s32 %s17, %s24
      %p187 = scmp.eq.s32.totalorder %s186, 0
      %s189 = sadd.s32 %s188, 1
      %s190 = scalar_select %p187, %s188, %s189
      %p193 = pneg %p187
      %p194 = scmp.eq.s32.totalorder %s17, 1
      %p195 = por %p193, %p194
      %p196 = scmp.ne.s32.totalorder %s188, %s191
      %p197 = scmp.eq.s32.totalorder %s17, 0
      %p198 = por %p196, %p197
      %p199 = scmp.ne.s32.totalorder %s188, %s191
      %p200 = scmp.eq.s32.totalorder %s22, 1
      %p201 = por %p199, %p200
      %p202 = scmp.ne.s32.totalorder %s191, %s192
      %p203 = scmp.eq.s32.totalorder %s22, 0
      %p204 = por %p202, %p203
      %p205 = scmp.ne.s32.totalorder %s191, %s192
      %p206 = scmp.eq.s32.totalorder %s23, 1
      %p207 = por %p205, %p206
      %p209 = scmp.ne.s32.totalorder %s192, %s208
      %p210 = scmp.eq.s32.totalorder %s23, 0
      %p211 = por %p209, %p210
      %p212 = scmp.le.s32.totalorder 1, %s17
      %p213 = scmp.lt.s32.totalorder %s17, 3
      %p214 = pnand %p212, %p213
      %p215 = pneg %p214
      // Predicated region
      $region9: #{tpu_custom_call.1} parent=5 // pred_check
        _
      $region10: #{tpu_custom_call.1} parent=5 // pred_check_branch
        %217 = sbr.rel (%p214) target = $region12
      $region11: #{tpu_custom_call.1} parent=5 // pred_region
        %s218 = ssub.s32 %s17, 1
        // Predicated region
        $region13: #{tpu_custom_call.1} parent=11 // pred_check
          %p219 = pneg %p68
        $region14: #{tpu_custom_call.1} parent=11 // pred_check_branch
          %221 = sbr.rel (%p219) target = $region16
        $region15: #{tpu_custom_call.1} parent=11 // pred_region
          %s223 = ssub.s32 2048, 2048
          %224 = vsyncadd [#allocation3], %s223
          %s225 = sshll.u32 [#allocation2], 4
          %s226 = int_to_ptr.vmem [resolvable:$true] %s225
          %231 = dma.hbm_to_vmem [thread:$0]  %s1, 2048, %s226, [#allocation3], 128, 128, 8
        $region16: #{tpu_custom_call.1} parent=11 // pred_fallthru
          _
        // Predicated region
        $region17: #{tpu_custom_call.1} parent=11 // pred_check
          %p232 = pneg %p89
        $region18: #{tpu_custom_call.1} parent=11 // pred_check_branch
          %234 = sbr.rel (%p232) target = $region20
        $region19: #{tpu_custom_call.1} parent=11 // pred_region
          _
        $region20: #{tpu_custom_call.1} parent=11 // pred_fallthru
          _
        // Predicated region
        $region21: #{tpu_custom_call.1} parent=11 // pred_check
          %p235 = pneg %p110
        $region22: #{tpu_custom_call.1} parent=11 // pred_check_branch
          %237 = sbr.rel (%p235) target = $region24
        $region23: #{tpu_custom_call.1} parent=11 // pred_region
          _
        $region24: #{tpu_custom_call.1} parent=11 // pred_fallthru
          _
        // Predicated region
        $region25: #{tpu_custom_call.1} parent=11 // pred_check
          %p238 = pneg %p131
        $region26: #{tpu_custom_call.1} parent=11 // pred_check_branch
          %240 = sbr.rel (%p238) target = $region28
        $region27: #{tpu_custom_call.1} parent=11 // pred_region
          _
        $region28: #{tpu_custom_call.1} parent=11 // pred_fallthru
          _
        // Predicated region
        $region29: #{tpu_custom_call.1} parent=11 // pred_check
          %p241 = pneg %p152
        $region30: #{tpu_custom_call.1} parent=11 // pred_check_branch
          %243 = sbr.rel (%p241) target = $region32
        $region31: #{tpu_custom_call.1} parent=11 // pred_region
          _
        $region32: #{tpu_custom_call.1} parent=11 // pred_fallthru
          _
      $region12: #{tpu_custom_call.1} parent=5 // pred_fallthru
        _
      %p244 = scmp.lt.s32.totalorder %s17, 2
      // Predicated region
      $region33: #{tpu_custom_call.1} parent=5 // pred_check
        %p245 = pneg %p244
      $region34: #{tpu_custom_call.1} parent=5 // pred_check_branch
        %247 = sbr.rel (%p245) target = $region36
      $region35: #{tpu_custom_call.1} parent=5 // pred_region
        // Predicated region
        $region37: #{tpu_custom_call.1} parent=35 // pred_check
          %p248 = pneg %p41
        $region38: #{tpu_custom_call.1} parent=35 // pred_check_branch
          %250 = sbr.rel (%p248) target = $region40
        $region39: #{tpu_custom_call.1} parent=35 // pred_region
          %p251 = scmp.lt.s32.totalorder %s17, 0
          %s252 = scalar_select %p251, %s17, 0
          %p253 = scmp.lt.s32.totalorder %s252, 0
          %s254 = scalar_select %p253, %s252, 0
          %s255 = smul.addr %s254, 8
          %s256 = scalar_lea.vmem %s0, %s255
          %p257 = scmp.lt.s32.totalorder %s17, 0
          %s258 = scalar_select %p257, %s17, 0
        $region40: #{tpu_custom_call.1} parent=35 // pred_fallthru
          _
        // Predicated region
        $region41: #{tpu_custom_call.1} parent=35 // pred_check
          %p259 = pneg %p172
        $region42: #{tpu_custom_call.1} parent=35 // pred_check_branch
          %261 = sbr.rel (%p259) target = $region44
        $region43: #{tpu_custom_call.1} parent=35 // pred_region
          %s262 = sand.u32 %s162, 1
          %s263 = sand.u32 %s162, 1
          %s264 = smul.addr %s263, 16
          %s265 = scalar_lea.vmem [#allocation5], %s264
          %s266 = smul.addr %s17, 8
          %s267 = scalar_lea.vmem %s6, %s266
          // Predicated region
          $region45: #{tpu_custom_call.1} parent=43 // pred_check
            _
          $region46: #{tpu_custom_call.1} parent=43 // pred_check_branch
            %269 = sbr.rel (0) target = $region48
          $region47: #{tpu_custom_call.1} parent=43 // pred_region
            // Predicated region
            $region49: #{tpu_custom_call.1} parent=47 // pred_check
              _
            $region50: #{tpu_custom_call.1} parent=47 // pred_check_branch
              %271 = sbr.rel (0) target = $region52
            $region51: #{tpu_custom_call.1} parent=47 // pred_region
              // Predicated region
              $region64: #{tpu_custom_call.1} parent=51 // pred_check
                _
              $region65: #{tpu_custom_call.1} parent=51 // pred_check_branch
                %288 = sbr.rel (0) target = $region67
              $region66: #{tpu_custom_call.1} parent=51 // pred_region
                loop: start=0, step=1, limit=1
                $region68: #{tpu_custom_call.1} parent=66 // loop_pre_header
                  _
                $region69: #{tpu_custom_call.1} parent=66 // loop_header
                  %s290 = sphi 0, %s294
                  %p291 = scmp.ge.s32.totalorder %s290, 1
                  %s295 = sphi %s267, %s267
                  %s296 = sphi %s265, %s265
                $region70: #{tpu_custom_call.1} parent=66 // loop_header_branch
                  %293 = sbr.rel (%p291) target = $region74
                $region71: #{tpu_custom_call.1} parent=66 // loop_body
                  %v297 = vld [vmem:[%s295] sm:$0xff]
                  %298 = vst [vmem:[%s296] sm:$0xff] %v297
                  %v299 = vld [vmem:[%s295 + $0x10] sm:$0xff]
                  %300 = vst [vmem:[%s296 + $0x8] sm:$0xff] %v299
                $region72: #{tpu_custom_call.1} parent=66 // loop_footer
                  %s294 = sadd.s32 1, %s290
                $region73: #{tpu_custom_call.1} parent=66 // loop_footer_branch
                  %289 = sbr.rel target = $region69
                $region74: #{tpu_custom_call.1} parent=66 // loop_exit
                  _
              $region67: #{tpu_custom_call.1} parent=51 // pred_fallthru
                _
              // Predicated region
              $region75: #{tpu_custom_call.1} parent=51 // pred_check
                _
              $region76: #{tpu_custom_call.1} parent=51 // pred_check_branch
                %302 = sbr.rel target = $region78
              $region77: #{tpu_custom_call.1} parent=51 // pred_region
                _
              $region78: #{tpu_custom_call.1} parent=51 // pred_fallthru
                _
            $region52: #{tpu_custom_call.1} parent=47 // pred_fallthru
              _
            // Predicated region
            $region53: #{tpu_custom_call.1} parent=47 // pred_check
              _
            $region54: #{tpu_custom_call.1} parent=47 // pred_check_branch
              %273 = sbr.rel target = $region56
            $region55: #{tpu_custom_call.1} parent=47 // pred_region
              loop: start=0, step=1, limit=1
              $region57: #{tpu_custom_call.1} parent=55 // loop_pre_header
                _
              $region58: #{tpu_custom_call.1} parent=55 // loop_header
                %s276 = sphi 0, %s280
                %p277 = scmp.ge.s32.totalorder %s276, 1
                %s281 = sphi %s267, %s267
                %s282 = sphi %s265, %s265
              $region59: #{tpu_custom_call.1} parent=55 // loop_header_branch
                %279 = sbr.rel (%p277) target = $region63
              $region60: #{tpu_custom_call.1} parent=55 // loop_body
                %v283 = vld [vmem:[%s281] sm:$0xff]
                %284 = vst [vmem:[%s282] sm:$0xff] %v283
                %v285 = vld [vmem:[%s281 + $0x10] sm:$0xff]
                %286 = vst [vmem:[%s282 + $0x8] sm:$0xff] %v285
              $region61: #{tpu_custom_call.1} parent=55 // loop_footer
                %s280 = sadd.s32 1, %s276
              $region62: #{tpu_custom_call.1} parent=55 // loop_footer_branch
                %275 = sbr.rel target = $region58
              $region63: #{tpu_custom_call.1} parent=55 // loop_exit
                _
            $region56: #{tpu_custom_call.1} parent=47 // pred_fallthru
              _
          $region48: #{tpu_custom_call.1} parent=43 // pred_fallthru
            _
          %303 = vnop
        $region44: #{tpu_custom_call.1} parent=35 // pred_fallthru
          _
      $region36: #{tpu_custom_call.1} parent=5 // pred_fallthru
        _
      %p304 = scmp.le.s32.totalorder 1, %s17
      %p305 = scmp.lt.s32.totalorder %s17, 3
      %p306 = pnand %p304, %p305
      %p307 = pneg %p306
      // Predicated region
      $region79: #{tpu_custom_call.1} parent=5 // pred_check
        _
      $region80: #{tpu_custom_call.1} parent=5 // pred_check_branch
        %309 = sbr.rel (%p306) target = $region82
      $region81: #{tpu_custom_call.1} parent=5 // pred_region
        %s310 = ssub.s32 %s17, 1
        // Predicated region
        $region83: #{tpu_custom_call.1} parent=81 // pred_check
          %p311 = pneg %p68
        $region84: #{tpu_custom_call.1} parent=81 // pred_check_branch
          %313 = sbr.rel (%p311) target = $region86
        $region85: #{tpu_custom_call.1} parent=81 // pred_region
          %314 = dma.done [#allocation3], 2048
        $region86: #{tpu_custom_call.1} parent=81 // pred_fallthru
          _
        %s315 = sand.u32 %s165, 1
        %s316 = sand.u32 %s165, 1
        %s317 = smul.addr %s316, 16
        %s318 = scalar_lea.vmem [#allocation5], %s317
        // Predicated region
        $region87: #{tpu_custom_call.1} parent=81 // pred_check
          %p319 = pneg %p178
        $region88: #{tpu_custom_call.1} parent=81 // pred_check_branch
          %321 = sbr.rel (%p319) target = $region90
        $region89: #{tpu_custom_call.1} parent=81 // pred_region
          _
        $region90: #{tpu_custom_call.1} parent=81 // pred_fallthru
          _
        %p322 = scmp.lt.s32.totalorder %s22, 0
        %s323 = scalar_select %p322, %s22, 0
        %p324 = scmp.lt.s32.totalorder %s323, 0
        %s325 = scalar_select %p324, %s323, 0
        %s326 = smul.addr %s325, 8
        %s327 = scalar_lea.vmem %s0, %s326
        %p328 = pneg %p47
        %p329 = pneg %p44
        %p330 = pneg %p68
        %p331 = pneg %p65
        %p332 = pneg %p89
        %p333 = pneg %p86
        %p334 = pneg %p110
        %p335 = pneg %p107
        %p336 = pneg %p131
        %p337 = pneg %p128
        %p338 = pneg %p152
        %p339 = pneg %p149
        %s340 = sand.u32 %s165, 1
        %s341 = sand.u32 %s165, 1
        %s342 = smul.addr %s341, 16
        %s343 = scalar_lea.vmem [#allocation5], %s342
        %p344 = pneg %p178
        %p345 = pneg %p175
        %p346 = pneg %p204
        %p347 = pneg %p201
        %s348 = sand.u32 %s191, 1
        %s349 = scalar_lea.sflag [#allocation4], %s348
        %s350 = sand.u32 %s191, 1
        %s351 = smul.addr %s350, 32
        %s352 = scalar_lea.vmem [#allocation6], %s351
        %p353 = scmp.lt.s32.totalorder %s22, 0
        %s354 = scalar_select %p353, %s22, 0
        %p355 = scmp.lt.s32.totalorder %s354, 0
        %s356 = scalar_select %p355, %s354, 0
        %s357 = smul.addr %s356, 8
        %s358 = scalar_lea.vmem %s0, %s357
        %p359 = scmp.lt.s32.totalorder %s22, 0
        %s360 = scalar_select %p359, %s22, 0
        %s361 = smul.u32 8, %s22
        %s362 = ssub.s32 12, %s361
        %p363 = scmp.lt.s32.totalorder %s362, 8
        %s364 = scalar_select %p363, %s362, 8
        %s365 = smul.u32 32, %s364
        %s366 = smul.u32 %s365, 2
        %s367 = smul.u32 %s22, 8
        %v368 = vlaneseq
        %v369 = vshrl.u32 %v368, 7
        %v370 = vstv %s367
        %v371 = vadd.s32 %v370, %v369
        %vm372 = vcmp.lt.s32.totalorder %v371, 8
        %v373 = vld [vmem:[%s2] sm:$0x1]
        %v374 = vld [vmem:[%s3] sm:$0x1]
        %v375 = vld [vmem:[%s4] sm:$0x1]
        %v376 = vld [vmem:[%s5] sm:$0x1]
        %v378 = vlaneseq
        %v379 = vshrl.u32 %v378, 7
        %v380 = vsub.s32 0, %v379
        %v381 = vrot.slane %v376, %v380
        %v383 = vld [vmem:[#allocation2] sm:$0xff]
        %v384 = vld [vmem:[#allocation2 + $0x8] sm:$0xff]
        %v385 = vld [vmem:[#allocation2 + $0x10] sm:$0xff]
        %v386 = vld [vmem:[#allocation2 + $0x18] sm:$0xff]
        %v387 = vld [vmem:[#allocation2 + $0x20] sm:$0xff]
        %v388 = vld [vmem:[#allocation2 + $0x28] sm:$0xff]
        %v389 = vld [vmem:[#allocation2 + $0x30] sm:$0xff]
        %v390 = vld [vmem:[#allocation2 + $0x38] sm:$0xff]
        %v391 = vld [vmem:[#allocation2 + $0x40] sm:$0xff]
        %v392 = vld [vmem:[#allocation2 + $0x48] sm:$0xff]
        %v393 = vld [vmem:[#allocation2 + $0x50] sm:$0xff]
        %v394 = vld [vmem:[#allocation2 + $0x58] sm:$0xff]
        %v395 = vld [vmem:[#allocation2 + $0x60] sm:$0xff]
        %v396 = vld [vmem:[#allocation2 + $0x68] sm:$0xff]
        %v397 = vld [vmem:[#allocation2 + $0x70] sm:$0xff]
        %v398 = vld [vmem:[#allocation2 + $0x78] sm:$0xff]
        %v399 = vld [vmem:[%s358] sm:$0xff]
        %v401 = vlaneseq
        %v402 = vshrl.u32 %v401, 7
        %v403 = vsub.s32 0, %v402
        %v404 = vrot.slane %v373, %v403
        %406 = vmatprep.subr.mxu0 0.0
        %407 = vmatpush1.msra.mxu0 %v383
        %408 = vmatprep.subr.mxu0 0.0
        %409 = vmatpush1.msra.mxu0 %v384
        %410 = vmatprep.subr.mxu0 0.0
        %411 = vmatpush1.msra.mxu0 %v385
        %412 = vmatprep.subr.mxu0 0.0
        %413 = vmatpush1.msra.mxu0 %v386
        %414 = vmatprep.subr.mxu0 0.0
        %415 = vmatpush1.msra.mxu0 %v387
        %416 = vmatprep.subr.mxu0 0.0
        %417 = vmatpush1.msra.mxu0 %v388
        %418 = vmatprep.subr.mxu0 0.0
        %419 = vmatpush1.msra.mxu0 %v389
        %420 = vmatprep.subr.mxu0 0.0
        %421 = vmatpush1.msra.mxu0 %v390
        %422 = vmatprep.subr.mxu0 0.0
        %423 = vmatpush1.msra.mxu0 %v391
        %424 = vmatprep.subr.mxu0 0.0
        %425 = vmatpush1.msra.mxu0 %v392
        %426 = vmatprep.subr.mxu0 0.0
        %427 = vmatpush1.msra.mxu0 %v393
        %428 = vmatprep.subr.mxu0 0.0
        %429 = vmatpush1.msra.mxu0 %v394
        %430 = vmatprep.subr.mxu0 0.0
        %431 = vmatpush1.msra.mxu0 %v395
        %432 = vmatprep.subr.mxu0 0.0
        %433 = vmatpush1.msra.mxu0 %v396
        %434 = vmatprep.subr.mxu0 0.0
        %435 = vmatpush1.msra.mxu0 %v397
        %436 = vmatprep.subr.mxu0 0.0
        %437 = vmatpush1.msra.mxu0 %v398
        %438 = vmatprep.subr.mxu0 0.0
        %439 = vmatpush1.msra.mxu0 0.0
        %440 = vmatprep.subr.mxu0 0.0
        %441 = vmatpush1.msra.mxu0 0.0
        %442 = vmatprep.subr.mxu0 0.0
        %443 = vmatpush1.msra.mxu0 0.0
        %444 = vmatprep.subr.mxu0 0.0
        %445 = vmatpush1.msra.mxu0 0.0
        %446 = vmatprep.subr.mxu0 0.0
        %447 = vmatpush1.msra.mxu0 0.0
        %448 = vmatprep.subr.mxu0 0.0
        %449 = vmatpush1.msra.mxu0 0.0
        %450 = vmatprep.subr.mxu0 0.0
        %451 = vmatpush1.msra.mxu0 0.0
        %452 = vmatprep.subr.mxu0 0.0
        %453 = vmatpush1.msra.mxu0 0.0
        %454 = vmatprep.subr.mxu0 0.0
        %455 = vmatpush1.msra.mxu0 0.0
        %456 = vmatprep.subr.mxu0 0.0
        %457 = vmatpush1.msra.mxu0 0.0
        %458 = vmatprep.subr.mxu0 0.0
        %459 = vmatpush1.msra.mxu0 0.0
        %460 = vmatprep.subr.mxu0 0.0
        %461 = vmatpush1.msra.mxu0 0.0
        %462 = vmatprep.subr.mxu0 0.0
        %463 = vmatpush1.msra.mxu0 0.0
        %464 = vmatprep.subr.mxu0 0.0
        %465 = vmatpush1.msra.mxu0 0.0
        %466 = vmatprep.subr.mxu0 0.0
        %467 = vmatpush1.msra.mxu0 0.0
        %468 = vmatprep.subr.mxu0 0.0
        %469 = vmatpush1.msra.mxu0 0.0
        %470 = vmatprep.mubr.f32.mxu0 0.0
        %471 = vmatmul.mubr.f32.gmra.mrb[0].mxu0 %v399
        %v472 = vpop.f32.mrb[0].mxu0
        %v473 = vadd.f32 %v404, %v472
        %v474 = vpop.f32.mrb[0].mxu0
        %475 = vdwg.mxu0
        %v476 = vmul.f32 %v473, 0.5
        %v477 = vmul.f32 %v473, 0.70710677
        %v478 = verf.f32.pop %v477
        %v479 = vadd.f32 %v478, 1.0
        %v480 = vmul.f32 %v476, %v479
        %481 = vadd.xlane.f32.xlu0 %v480
        %v482 = vpop.xlane.xlu0 %481
        %v483 = vrcp.pop 128.0
        %v484 = vmul.f32 %v482, %v483
        %v485 = vsub.f32 %v480, %v484
        %v486 = vmul.f32 %v485, %v485
        %487 = vadd.xlane.f32.xlu0 %v486
        %v488 = vpop.xlane.xlu0 %487
        %v489 = vmul.f32 %v488, %v483
        %v490 = vadd.f32 %v489, 1e-05
        %v491 = vrsqrt.pop %v490
        %v492 = vmul.f32 %v485, %v491
        %v494 = vlaneseq
        %v495 = vshrl.u32 %v494, 7
        %v496 = vsub.s32 0, %v495
        %v497 = vrot.slane %v374, %v496
        %v499 = vmul.f32 %v492, %v497
        %v501 = vlaneseq
        %v502 = vshrl.u32 %v501, 7
        %v503 = vsub.s32 0, %v502
        %v504 = vrot.slane %v375, %v503
        %v506 = vadd.f32 %v499, %v504
        %v507 = vsel %vm372, 1, 0
        %vm508 = vcmp.eq.s32.totalorder %v507, 1
        %v509 = vsel %vm508, %v506, %v381
        %v511 = vcombine.high %v509, %v509
        %v513 = vunpack.c.l.s4 1966171168
        %v514 = vunpack.c.0.s8 %v513
        %v515 = vlaneseq
        %v516 = vshrl.u32 %v515, 7
        %v517 = vsub.s32 %v514, %v516
        %v518 = vrot.slane %v509, %v517
        %v520 = vunpack.c.l.s4 1966171168
        %v521 = vunpack.c.0.s8 %v520
        %v522 = vlaneseq
        %v523 = vshrl.u32 %v522, 7
        %v524 = vsub.s32 %v521, %v523
        %v525 = vrot.slane %v511, %v524
        %v526 = vcombine.high %v518, %v518
        %v527 = vcombine.high %v525, %v525
        %v529 = vunpack.c.l.s4 1966171168
        %v530 = vunpack.c.0.s8 %v529
        %v531 = vlaneseq
        %v532 = vshrl.u32 %v531, 7
        %v533 = vsub.s32 %v530, %v532
        %v534 = vrot.slane %v518, %v533
        %v536 = vunpack.c.l.s4 1966171168
        %v537 = vunpack.c.0.s8 %v536
        %v538 = vlaneseq
        %v539 = vshrl.u32 %v538, 7
        %v540 = vsub.s32 %v537, %v539
        %v541 = vrot.slane %v525, %v540
        %v543 = vunpack.c.l.s4 1966171168
        %v544 = vunpack.c.0.s8 %v543
        %v545 = vlaneseq
        %v546 = vshrl.u32 %v545, 7
        %v547 = vsub.s32 %v544, %v546
        %v548 = vrot.slane %v526, %v547
        %v550 = vunpack.c.l.s4 1966171168
        %v551 = vunpack.c.0.s8 %v550
        %v552 = vlaneseq
        %v553 = vshrl.u32 %v552, 7
        %v554 = vsub.s32 %v551, %v553
        %v555 = vrot.slane %v527, %v554
        %v556 = vcombine.high %v534, %v534
        %v557 = vcombine.high %v541, %v541
        %v558 = vcombine.high %v548, %v548
        %v559 = vcombine.high %v555, %v555
        %568 = vst [vmem:[%s352] sm:$0x1] %v534
        %569 = vst [vmem:[%s352 + $0x4] sm:$0x1] %v548
        %570 = vst [vmem:[%s352 + $0x8] sm:$0x1] %v556
        %571 = vst [vmem:[%s352 + $0xc] sm:$0x1] %v558
        %572 = vst [vmem:[%s352 + $0x10] sm:$0x1] %v541
        %573 = vst [vmem:[%s352 + $0x14] sm:$0x1] %v555
        %574 = vst [vmem:[%s352 + $0x18] sm:$0x1] %v557
        %575 = vst [vmem:[%s352 + $0x1c] sm:$0x1] %v559
        %v576 = vld [vmem:[%s318] sm:$0xff]
        %v578 = vcombine.high %v576, %v576
        %v580 = vunpack.c.l.s4 1966171168
        %v581 = vunpack.c.0.s8 %v580
        %v582 = vlaneseq
        %v583 = vshrl.u32 %v582, 7
        %v584 = vsub.s32 %v581, %v583
        %v585 = vrot.slane %v576, %v584
        %v587 = vunpack.c.l.s4 1966171168
        %v588 = vunpack.c.0.s8 %v587
        %v589 = vlaneseq
        %v590 = vshrl.u32 %v589, 7
        %v591 = vsub.s32 %v588, %v590
        %v592 = vrot.slane %v578, %v591
        %v593 = vcombine.high %v585, %v585
        %v594 = vcombine.high %v592, %v592
        %v596 = vunpack.c.l.s4 1966171168
        %v597 = vunpack.c.0.s8 %v596
        %v598 = vlaneseq
        %v599 = vshrl.u32 %v598, 7
        %v600 = vsub.s32 %v597, %v599
        %v601 = vrot.slane %v585, %v600
        %v603 = vunpack.c.l.s4 1966171168
        %v604 = vunpack.c.0.s8 %v603
        %v605 = vlaneseq
        %v606 = vshrl.u32 %v605, 7
        %v607 = vsub.s32 %v604, %v606
        %v608 = vrot.slane %v592, %v607
        %v610 = vunpack.c.l.s4 1966171168
        %v611 = vunpack.c.0.s8 %v610
        %v612 = vlaneseq
        %v613 = vshrl.u32 %v612, 7
        %v614 = vsub.s32 %v611, %v613
        %v615 = vrot.slane %v593, %v614
        %v617 = vunpack.c.l.s4 1966171168
        %v618 = vunpack.c.0.s8 %v617
        %v619 = vlaneseq
        %v620 = vshrl.u32 %v619, 7
        %v621 = vsub.s32 %v618, %v620
        %v622 = vrot.slane %v594, %v621
        %v623 = vcombine.high %v601, %v601
        %v624 = vcombine.high %v608, %v608
        %v625 = vcombine.high %v615, %v615
        %v626 = vcombine.high %v622, %v622
        %635 = vst [vmem:[%s352 + $0x2] sm:$0x1] %v601
        %636 = vst [vmem:[%s352 + $0x6] sm:$0x1] %v615
        %637 = vst [vmem:[%s352 + $0xa] sm:$0x1] %v623
        %638 = vst [vmem:[%s352 + $0xe] sm:$0x1] %v625
        %639 = vst [vmem:[%s352 + $0x12] sm:$0x1] %v608
        %640 = vst [vmem:[%s352 + $0x16] sm:$0x1] %v622
        %641 = vst [vmem:[%s352 + $0x1a] sm:$0x1] %v624
        %642 = vst [vmem:[%s352 + $0x1e] sm:$0x1] %v626
        %s643 = scalar_lea.vmem %s358, 8
        %v644 = vld [vmem:[%s643] sm:$0xff]
        %645 = vmatprep.subr.mxu0 0.0
        %646 = vmatpush1.msra.mxu0 %v383
        %647 = vmatprep.subr.mxu0 0.0
        %648 = vmatpush1.msra.mxu0 %v384
        %649 = vmatprep.subr.mxu0 0.0
        %650 = vmatpush1.msra.mxu0 %v385
        %651 = vmatprep.subr.mxu0 0.0
        %652 = vmatpush1.msra.mxu0 %v386
        %653 = vmatprep.subr.mxu0 0.0
        %654 = vmatpush1.msra.mxu0 %v387
        %655 = vmatprep.subr.mxu0 0.0
        %656 = vmatpush1.msra.mxu0 %v388
        %657 = vmatprep.subr.mxu0 0.0
        %658 = vmatpush1.msra.mxu0 %v389
        %659 = vmatprep.subr.mxu0 0.0
        %660 = vmatpush1.msra.mxu0 %v390
        %661 = vmatprep.subr.mxu0 0.0
        %662 = vmatpush1.msra.mxu0 %v391
        %663 = vmatprep.subr.mxu0 0.0
        %664 = vmatpush1.msra.mxu0 %v392
        %665 = vmatprep.subr.mxu0 0.0
        %666 = vmatpush1.msra.mxu0 %v393
        %667 = vmatprep.subr.mxu0 0.0
        %668 = vmatpush1.msra.mxu0 %v394
        %669 = vmatprep.subr.mxu0 0.0
        %670 = vmatpush1.msra.mxu0 %v395
        %671 = vmatprep.subr.mxu0 0.0
        %672 = vmatpush1.msra.mxu0 %v396
        %673 = vmatprep.subr.mxu0 0.0
        %674 = vmatpush1.msra.mxu0 %v397
        %675 = vmatprep.subr.mxu0 0.0
        %676 = vmatpush1.msra.mxu0 %v398
        %677 = vmatprep.subr.mxu0 0.0
        %678 = vmatpush1.msra.mxu0 0.0
        %679 = vmatprep.subr.mxu0 0.0
        %680 = vmatpush1.msra.mxu0 0.0
        %681 = vmatprep.subr.mxu0 0.0
        %682 = vmatpush1.msra.mxu0 0.0
        %683 = vmatprep.subr.mxu0 0.0
        %684 = vmatpush1.msra.mxu0 0.0
        %685 = vmatprep.subr.mxu0 0.0
        %686 = vmatpush1.msra.mxu0 0.0
        %687 = vmatprep.subr.mxu0 0.0
        %688 = vmatpush1.msra.mxu0 0.0
        %689 = vmatprep.subr.mxu0 0.0
        %690 = vmatpush1.msra.mxu0 0.0
        %691 = vmatprep.subr.mxu0 0.0
        %692 = vmatpush1.msra.mxu0 0.0
        %693 = vmatprep.subr.mxu0 0.0
        %694 = vmatpush1.msra.mxu0 0.0
        %695 = vmatprep.subr.mxu0 0.0
        %696 = vmatpush1.msra.mxu0 0.0
        %697 = vmatprep.subr.mxu0 0.0
        %698 = vmatpush1.msra.mxu0 0.0
        %699 = vmatprep.subr.mxu0 0.0
        %700 = vmatpush1.msra.mxu0 0.0
        %701 = vmatprep.subr.mxu0 0.0
        %702 = vmatpush1.msra.mxu0 0.0
        %703 = vmatprep.subr.mxu0 0.0
        %704 = vmatpush1.msra.mxu0 0.0
        %705 = vmatprep.subr.mxu0 0.0
        %706 = vmatpush1.msra.mxu0 0.0
        %707 = vmatprep.subr.mxu0 0.0
        %708 = vmatpush1.msra.mxu0 0.0
        %709 = vmatprep.mubr.f32.mxu0 0.0
        %710 = vmatmul.mubr.f32.gmra.mrb[0].mxu0 %v644
        %v711 = vpop.f32.mrb[0].mxu0
        %v712 = vadd.f32 %v404, %v711
        %v713 = vpop.f32.mrb[0].mxu0
        %714 = vdwg.mxu0
        %v715 = vmul.f32 %v712, 0.5
        %v716 = vmul.f32 %v712, 0.70710677
        %v717 = verf.f32.pop %v716
        %v718 = vadd.f32 %v717, 1.0
        %v719 = vmul.f32 %v715, %v718
        %720 = vadd.xlane.f32.xlu0 %v719
        %v721 = vpop.xlane.xlu0 %720
        %v722 = vmul.f32 %v721, %v483
        %v723 = vsub.f32 %v719, %v722
        %v724 = vmul.f32 %v723, %v723
        %725 = vadd.xlane.f32.xlu0 %v724
        %v726 = vpop.xlane.xlu0 %725
        %v727 = vmul.f32 %v726, %v483
        %v728 = vadd.f32 %v727, 1e-05
        %v729 = vrsqrt.pop %v728
        %v730 = vmul.f32 %v723, %v729
        %v731 = vmul.f32 %v730, %v497
        %v732 = vadd.f32 %v731, %v504
        %v733 = vsel %vm508, %v732, %v381
        %v735 = vcombine.high %v733, %v733
        %v737 = vunpack.c.l.s4 1966171168
        %v738 = vunpack.c.0.s8 %v737
        %v739 = vlaneseq
        %v740 = vshrl.u32 %v739, 7
        %v741 = vsub.s32 %v738, %v740
        %v742 = vrot.slane %v733, %v741
        %v744 = vunpack.c.l.s4 1966171168
        %v745 = vunpack.c.0.s8 %v744
        %v746 = vlaneseq
        %v747 = vshrl.u32 %v746, 7
        %v748 = vsub.s32 %v745, %v747
        %v749 = vrot.slane %v735, %v748
        %v750 = vcombine.high %v742, %v742
        %v751 = vcombine.high %v749, %v749
        %v753 = vunpack.c.l.s4 1966171168
        %v754 = vunpack.c.0.s8 %v753
        %v755 = vlaneseq
        %v756 = vshrl.u32 %v755, 7
        %v757 = vsub.s32 %v754, %v756
        %v758 = vrot.slane %v742, %v757
        %v760 = vunpack.c.l.s4 1966171168
        %v761 = vunpack.c.0.s8 %v760
        %v762 = vlaneseq
        %v763 = vshrl.u32 %v762, 7
        %v764 = vsub.s32 %v761, %v763
        %v765 = vrot.slane %v749, %v764
        %v767 = vunpack.c.l.s4 1966171168
        %v768 = vunpack.c.0.s8 %v767
        %v769 = vlaneseq
        %v770 = vshrl.u32 %v769, 7
        %v771 = vsub.s32 %v768, %v770
        %v772 = vrot.slane %v750, %v771
        %v774 = vunpack.c.l.s4 1966171168
        %v775 = vunpack.c.0.s8 %v774
        %v776 = vlaneseq
        %v777 = vshrl.u32 %v776, 7
        %v778 = vsub.s32 %v775, %v777
        %v779 = vrot.slane %v751, %v778
        %v780 = vcombine.high %v758, %v758
        %v781 = vcombine.high %v765, %v765
        %v782 = vcombine.high %v772, %v772
        %v783 = vcombine.high %v779, %v779
        %792 = vst [vmem:[%s352 + $0x1] sm:$0x1] %v758
        %793 = vst [vmem:[%s352 + $0x5] sm:$0x1] %v772
        %794 = vst [vmem:[%s352 + $0x9] sm:$0x1] %v780
        %795 = vst [vmem:[%s352 + $0xd] sm:$0x1] %v782
        %796 = vst [vmem:[%s352 + $0x11] sm:$0x1] %v765
        %797 = vst [vmem:[%s352 + $0x15] sm:$0x1] %v779
        %798 = vst [vmem:[%s352 + $0x19] sm:$0x1] %v781
        %799 = vst [vmem:[%s352 + $0x1d] sm:$0x1] %v783
        %s800 = scalar_lea.vmem %s318, 8 [#allocation5]
        %v801 = vld [vmem:[%s800] sm:$0xff]
        %v803 = vcombine.high %v801, %v801
        %v805 = vunpack.c.l.s4 1966171168
        %v806 = vunpack.c.0.s8 %v805
        %v807 = vlaneseq
        %v808 = vshrl.u32 %v807, 7
        %v809 = vsub.s32 %v806, %v808
        %v810 = vrot.slane %v801, %v809
        %v812 = vunpack.c.l.s4 1966171168
        %v813 = vunpack.c.0.s8 %v812
        %v814 = vlaneseq
        %v815 = vshrl.u32 %v814, 7
        %v816 = vsub.s32 %v813, %v815
        %v817 = vrot.slane %v803, %v816
        %v818 = vcombine.high %v810, %v810
        %v819 = vcombine.high %v817, %v817
        %v821 = vunpack.c.l.s4 1966171168
        %v822 = vunpack.c.0.s8 %v821
        %v823 = vlaneseq
        %v824 = vshrl.u32 %v823, 7
        %v825 = vsub.s32 %v822, %v824
        %v826 = vrot.slane %v810, %v825
        %v828 = vunpack.c.l.s4 1966171168
        %v829 = vunpack.c.0.s8 %v828
        %v830 = vlaneseq
        %v831 = vshrl.u32 %v830, 7
        %v832 = vsub.s32 %v829, %v831
        %v833 = vrot.slane %v817, %v832
        %v835 = vunpack.c.l.s4 1966171168
        %v836 = vunpack.c.0.s8 %v835
        %v837 = vlaneseq
        %v838 = vshrl.u32 %v837, 7
        %v839 = vsub.s32 %v836, %v838
        %v840 = vrot.slane %v818, %v839
        %v842 = vunpack.c.l.s4 1966171168
        %v843 = vunpack.c.0.s8 %v842
        %v844 = vlaneseq
        %v845 = vshrl.u32 %v844, 7
        %v846 = vsub.s32 %v843, %v845
        %v847 = vrot.slane %v819, %v846
        %v848 = vcombine.high %v826, %v826
        %v849 = vcombine.high %v833, %v833
        %v850 = vcombine.high %v840, %v840
        %v851 = vcombine.high %v847, %v847
        %860 = vst [vmem:[%s352 + $0x3] sm:$0x1] %v826
        %861 = vst [vmem:[%s352 + $0x7] sm:$0x1] %v840
        %862 = vst [vmem:[%s352 + $0xb] sm:$0x1] %v848
        %863 = vst [vmem:[%s352 + $0xf] sm:$0x1] %v850
        %864 = vst [vmem:[%s352 + $0x13] sm:$0x1] %v833
        %865 = vst [vmem:[%s352 + $0x17] sm:$0x1] %v847
        %866 = vst [vmem:[%s352 + $0x1b] sm:$0x1] %v849
        %867 = vst [vmem:[%s352 + $0x1f] sm:$0x1] %v851
        %s868 = sand.u32 %s191, 1
        %s869 = scalar_lea.sflag [#allocation4], %s868
        %s870 = sand.u32 %s191, 1
        %s871 = smul.addr %s870, 32
        %s872 = scalar_lea.vmem [#allocation6], %s871
        // Predicated region
        $region91: #{tpu_custom_call.1} parent=81 // pred_check
          %p873 = pneg %p201
        $region92: #{tpu_custom_call.1} parent=81 // pred_check_branch
          %875 = sbr.rel (%p873) target = $region94
        $region93: #{tpu_custom_call.1} parent=81 // pred_region
          %s876 = smul.u32 8, %s22
          %s877 = ssub.s32 12, %s876
          %p878 = scmp.lt.s32.totalorder %s877, 8
          %s879 = scalar_select %p878, %s877, 8
          %s880 = smul.u32 32, %s879
          %s881 = smul.u32 %s880, 2
          %s883 = ssub.s32 512, %s881
          %884 = vsyncadd %s869, %s883
          %p885 = scmp.ne.s32.totalorder 0, %s881
          %s886 = smul.addr %s876, 2
          %s887 = smul.addr %s886, 32
          %s888 = scalar_lea.hbm %s7, %s887
          %s889 = smul.u32 4, %s879
          %s890 = sshll.u32 %s872, 4
          %s891 = int_to_ptr.vmem [resolvable:$true] %s890
          %s892 = sshll.u32 %s889, 4
          %896 = dma.vmem_to_hbm [thread:$0]  (%p885), %s891, %s892, %s888, %s869, 64, 64, 4
        $region94: #{tpu_custom_call.1} parent=81 // pred_fallthru
          _
      $region82: #{tpu_custom_call.1} parent=5 // pred_fallthru
        _
      %p897 = scmp.le.s32.totalorder 2, %s17
      // Predicated region
      $region95: #{tpu_custom_call.1} parent=5 // pred_check
        %p898 = pneg %p897
      $region96: #{tpu_custom_call.1} parent=5 // pred_check_branch
        %900 = sbr.rel (%p898) target = $region98
      $region97: #{tpu_custom_call.1} parent=5 // pred_region
        %s901 = ssub.s32 %s17, 2
        // Predicated region
        $region99: #{tpu_custom_call.1} parent=97 // pred_check
          %p902 = pneg %p207
        $region100: #{tpu_custom_call.1} parent=97 // pred_check_branch
          %904 = sbr.rel (%p902) target = $region102
        $region101: #{tpu_custom_call.1} parent=97 // pred_region
          %s905 = sand.u32 %s192, 1
          %s906 = scalar_lea.sflag [#allocation4], %s905
          %s907 = sand.u32 %s192, 1
          %s908 = smul.addr %s907, 32
          %s909 = scalar_lea.vmem [#allocation6], %s908
          %910 = dma.done %s906, 512
        $region102: #{tpu_custom_call.1} parent=97 // pred_fallthru
          _
      $region98: #{tpu_custom_call.1} parent=5 // pred_fallthru
        _
    $region6: #{tpu_custom_call.1} parent=1 // loop_footer
      %s21 = sadd.s32 1, %s17
    $region7: #{tpu_custom_call.1} parent=1 // loop_footer_branch
      %16 = sbr.rel target = $region3
    $region8: #{tpu_custom_call.1} parent=1 // loop_exit
      _
    %911 = vsyncpa [#allocation3], 1
    %s912 = scalar_lea.sflag [#allocation3], 1
    %913 = vsyncpa %s912, 1
    %914 = vsyncpa [#allocation4], 1
    %s915 = scalar_lea.sflag [#allocation4], 1
    %916 = vsyncpa %s915, 1

</llo_original>
